<compile_context>
chip_gen: v7x
topology: tpu7x:2x2x1
jax: 0.10.0
libtpu: 0.0.40
codegen_flags: <defaults>
</compile_context>

<pallas_src>
import jax
import jax.numpy as jnp
from jax.experimental import pallas as pl
from jax.experimental.pallas import tpu as pltpu


def _cdiv(a, b):
    return -(-a // b)


def _quadric_kernel(p_ref, x_ref, o_ref):
    # p_ref: SMEM f32[9] = [q00, q01, q10, q11, q20, q21, w0, w1, b]
    # x_ref: VMEM (2, TM, L)   x_ref[0] = x0 slab, x_ref[1] = x1 slab
    # o_ref: VMEM (3, TM, L)   one (TM, L) slab per output row
    x0 = x_ref[0]
    x1 = x_ref[1]
    x0s = x0 * x0
    x1s = x1 * x1

    # Hoist scalar (SMEM) reads once.
    q00, q01, q10, q11, q20, q21 = (p_ref[k] for k in range(6))
    w0, w1, b = p_ref[6], p_ref[7], p_ref[8]

    # Shared linear + bias term, computed once and reused by all three rows.
    lin = w0 * x0 + w1 * x1 + b

    dt = o_ref.dtype
    o_ref[0] = (q00 * x0s + q01 * x1s + lin).astype(dt)
    o_ref[1] = (q10 * x0s + q11 * x1s + lin).astype(dt)
    o_ref[2] = (q20 * x0s + q21 * x1s + lin).astype(dt)


def quadric_neuron_r2(i, q, w, b, *, lanes=512, max_tile_rows=1024,
                      out_dtype=jnp.float32):
    """i: (N, 2), q: (3, 2), w: (1, 2), b: (1,) -> (3, N)."""
    assert lanes % 128 == 0, "lanes must be a multiple of 128"
    assert max_tile_rows % 8 == 0, "max_tile_rows must be a multiple of 8"
    i = i.astype(jnp.float32)
    n = i.shape[0]
    L = lanes

    # Derive tile rows from N: bounded padding, roughly equal tiles,
    # grid length >= 2 whenever N is big enough (v7x megacore).
    r = max(_cdiv(n, L), 1)                 # rows of L points needed
    num_tiles = _cdiv(r, max_tile_rows)     # grid length
    tm = _cdiv(_cdiv(r, num_tiles), 8) * 8  # rows per tile (multiple of 8)
    r_pad = num_tiles * tm
    n_pad = r_pad * L

    x = i
    if n_pad != n:
        x = jnp.pad(x, ((0, n_pad - n), (0, 0)))
    # One transpose copy (see TODO above); the reshape afterwards is free.
    x = x.T.reshape(2, r_pad, L)

    # Flatten the 9 parameters into one scalar-prefetch (SMEM) array.
    params = jnp.concatenate(
        [q.reshape(-1), w.reshape(-1), b.reshape(-1)]).astype(jnp.float32)

    out_bytes = 3 * jnp.dtype(out_dtype).itemsize
    out = pl.pallas_call(
        _quadric_kernel,
        out_shape=jax.ShapeDtypeStruct((3, r_pad, L), out_dtype),
        grid_spec=pltpu.PrefetchScalarGridSpec(
            num_scalar_prefetch=1,
            grid=(num_tiles,),
            in_specs=[pl.BlockSpec((2, tm, L), lambda t, p: (0, t, 0))],
            out_specs=pl.BlockSpec((3, tm, L), lambda t, p: (0, t, 0)),
        ),
        compiler_params=pltpu.CompilerParams(
            dimension_semantics=("parallel",),
            vmem_limit_bytes=40 * 1024 * 1024,
        ),
        cost_estimate=pl.CostEstimate(
            flops=18 * n_pad,
            transcendentals=0,
            bytes_accessed=(8 + out_bytes) * n_pad + 36),
    )(params, x)

    out = out.reshape(3, n_pad)
    return out[:, :n] if n_pad != n else out


def _reference(i, q, w, b):
    isqr = i * i
    qi = q @ isqr.T
    wi = w @ i.T
    return qi + wi + b  # b (1,) broadcasts along the last axis, as in torch


if __name__ == "__main__":
    key = jax.random.PRNGKey(0)
    k_i, k_q, k_w, k_b, k_i2 = jax.random.split(key, 5)

    # Parameters as in the module __init__.
    q = jax.random.normal(k_q, (3, 2), dtype=jnp.float32)
    w = jax.random.normal(k_w, (1, 2), dtype=jnp.float32)
    b = jax.random.normal(k_b, (1,), dtype=jnp.float32)

    # Small shape consistent with the module: N points in R^2.
    N = 8
    i_small = jax.random.normal(k_i, (N, 2), dtype=jnp.float32)
    out = jax.block_until_ready(quadric_neuron_r2(i_small, q, w, b))
    ref = _reference(i_small, q, w, b)
    assert out.shape == (3, N), out.shape
    assert jnp.allclose(out, ref, atol=1e-5, rtol=1e-5)

    # Exercise the multi-tile grid + padded-tail path (small max_tile_rows
    # forces a grid of length > 1 without needing a huge input).
    N2 = 10000
    i_big = jax.random.normal(k_i2, (N2, 2), dtype=jnp.float32)
    out2 = jax.block_until_ready(
        quadric_neuron_r2(i_big, q, w, b, max_tile_rows=8))
    ref2 = _reference(i_big, q, w, b)
    assert out2.shape == (3, N2), out2.shape
    assert jnp.allclose(out2, ref2, atol=1e-5, rtol=1e-5)

    print("KERNEL_OK")
</pallas_src>

<mosaic_0001>
module attributes {stable_mosaic.version = 11 : i64} {
  func.func @_quadric_kernel(%arg0: i32, %arg1: memref<9xf32, #tpu.memory_space<smem>>, %arg2: memref<2x8x512xf32, #tpu.memory_space<vmem>>, %arg3: memref<3x8x512xf32, #tpu.memory_space<vmem>>) attributes {dimension_semantics = [#tpu.dimension_semantics<parallel>], iteration_bounds = array<i64: 1>, scalar_prefetch = 1 : i64, scratch_operands = 0 : i64, tpu.core_type = #tpu.core_type<tc>, window_params = [{transform_indices = @transform_0, window_bounds = array<i64: 2, 8, 512>}, {transform_indices = @transform_1, window_bounds = array<i64: 3, 8, 512>}]} {
    %c0 = arith.constant 0 : index
    %c0_0 = arith.constant 0 : index
    %c0_1 = arith.constant 0 : index
    %0 = vector.load %arg2[%c0, %c0_0, %c0_1] : memref<2x8x512xf32, #tpu.memory_space<vmem>>, vector<1x8x512xf32>
    %1 = vector.shape_cast %0 : vector<1x8x512xf32> to vector<8x512xf32>
    %c1 = arith.constant 1 : index
    %c0_2 = arith.constant 0 : index
    %c0_3 = arith.constant 0 : index
    %2 = vector.load %arg2[%c1, %c0_2, %c0_3] : memref<2x8x512xf32, #tpu.memory_space<vmem>>, vector<1x8x512xf32>
    %3 = vector.shape_cast %2 : vector<1x8x512xf32> to vector<8x512xf32>
    %4 = arith.mulf %1, %1 : vector<8x512xf32>
    %5 = arith.mulf %3, %3 : vector<8x512xf32>
    %c0_4 = arith.constant 0 : index
    %6 = memref.load %arg1[%c0_4] : memref<9xf32, #tpu.memory_space<smem>>
    %c1_5 = arith.constant 1 : index
    %7 = memref.load %arg1[%c1_5] : memref<9xf32, #tpu.memory_space<smem>>
    %c2 = arith.constant 2 : index
    %8 = memref.load %arg1[%c2] : memref<9xf32, #tpu.memory_space<smem>>
    %c3 = arith.constant 3 : index
    %9 = memref.load %arg1[%c3] : memref<9xf32, #tpu.memory_space<smem>>
    %c4 = arith.constant 4 : index
    %10 = memref.load %arg1[%c4] : memref<9xf32, #tpu.memory_space<smem>>
    %c5 = arith.constant 5 : index
    %11 = memref.load %arg1[%c5] : memref<9xf32, #tpu.memory_space<smem>>
    %c6 = arith.constant 6 : index
    %12 = memref.load %arg1[%c6] : memref<9xf32, #tpu.memory_space<smem>>
    %c7 = arith.constant 7 : index
    %13 = memref.load %arg1[%c7] : memref<9xf32, #tpu.memory_space<smem>>
    %c8 = arith.constant 8 : index
    %14 = memref.load %arg1[%c8] : memref<9xf32, #tpu.memory_space<smem>>
    %15 = vector.broadcast %12 : f32 to vector<8x512xf32>
    %16 = arith.mulf %15, %1 : vector<8x512xf32>
    %17 = vector.broadcast %13 : f32 to vector<8x512xf32>
    %18 = arith.mulf %17, %3 : vector<8x512xf32>
    %19 = arith.addf %16, %18 : vector<8x512xf32>
    %20 = vector.broadcast %14 : f32 to vector<8x512xf32>
    %21 = arith.addf %19, %20 : vector<8x512xf32>
    %22 = vector.broadcast %6 : f32 to vector<8x512xf32>
    %23 = arith.mulf %22, %4 : vector<8x512xf32>
    %24 = vector.broadcast %7 : f32 to vector<8x512xf32>
    %25 = arith.mulf %24, %5 : vector<8x512xf32>
    %26 = arith.addf %23, %25 : vector<8x512xf32>
    %27 = arith.addf %26, %21 : vector<8x512xf32>
    %c0_6 = arith.constant 0 : index
    %c0_7 = arith.constant 0 : index
    %c0_8 = arith.constant 0 : index
    %28 = vector.load %arg3[%c0_6, %c0_7, %c0_8] : memref<3x8x512xf32, #tpu.memory_space<vmem>>, vector<1x8x512xf32>
    %29 = vector.shape_cast %28 : vector<1x8x512xf32> to vector<8x512xf32>
    %30 = vector.shape_cast %27 : vector<8x512xf32> to vector<1x8x512xf32>
    tpu.vector_store %arg3[%c0_6, %c0_7, %c0_8], %30 {strides = array<i32>} : memref<3x8x512xf32, #tpu.memory_space<vmem>>, vector<1x8x512xf32>,
    %31 = vector.broadcast %8 : f32 to vector<8x512xf32>
    %32 = arith.mulf %31, %4 : vector<8x512xf32>
    %33 = vector.broadcast %9 : f32 to vector<8x512xf32>
    %34 = arith.mulf %33, %5 : vector<8x512xf32>
    %35 = arith.addf %32, %34 : vector<8x512xf32>
    %36 = arith.addf %35, %21 : vector<8x512xf32>
    %c1_9 = arith.constant 1 : index
    %c0_10 = arith.constant 0 : index
    %c0_11 = arith.constant 0 : index
    %37 = vector.load %arg3[%c1_9, %c0_10, %c0_11] : memref<3x8x512xf32, #tpu.memory_space<vmem>>, vector<1x8x512xf32>
    %38 = vector.shape_cast %37 : vector<1x8x512xf32> to vector<8x512xf32>
    %39 = vector.shape_cast %36 : vector<8x512xf32> to vector<1x8x512xf32>
    tpu.vector_store %arg3[%c1_9, %c0_10, %c0_11], %39 {strides = array<i32>} : memref<3x8x512xf32, #tpu.memory_space<vmem>>, vector<1x8x512xf32>,
    %40 = vector.broadcast %10 : f32 to vector<8x512xf32>
    %41 = arith.mulf %40, %4 : vector<8x512xf32>
    %42 = vector.broadcast %11 : f32 to vector<8x512xf32>
    %43 = arith.mulf %42, %5 : vector<8x512xf32>
    %44 = arith.addf %41, %43 : vector<8x512xf32>
    %45 = arith.addf %44, %21 : vector<8x512xf32>
    %c2_12 = arith.constant 2 : index
    %c0_13 = arith.constant 0 : index
    %c0_14 = arith.constant 0 : index
    %46 = vector.load %arg3[%c2_12, %c0_13, %c0_14] : memref<3x8x512xf32, #tpu.memory_space<vmem>>, vector<1x8x512xf32>
    %47 = vector.shape_cast %46 : vector<1x8x512xf32> to vector<8x512xf32>
    %48 = vector.shape_cast %45 : vector<8x512xf32> to vector<1x8x512xf32>
    tpu.vector_store %arg3[%c2_12, %c0_13, %c0_14], %48 {strides = array<i32>} : memref<3x8x512xf32, #tpu.memory_space<vmem>>, vector<1x8x512xf32>,
    return
  }
  func.func @transform_0(%arg0: i32, %arg1: memref<9xf32, #tpu.memory_space<smem>>) -> (i32, i32, i32) {
    %c0_i32 = arith.constant 0 : i32
    %c0_i32_0 = arith.constant 0 : i32
    %c0_i32_1 = arith.constant 0 : i32
    return %c0_i32, %arg0, %c0_i32_0 : i32, i32, i32
  }
  func.func @transform_1(%arg0: i32, %arg1: memref<9xf32, #tpu.memory_space<smem>>) -> (i32, i32, i32) {
    %c0_i32 = arith.constant 0 : i32
    %c0_i32_0 = arith.constant 0 : i32
    %c0_i32_1 = arith.constant 0 : i32
    return %c0_i32, %arg0, %c0_i32_0 : i32, i32, i32
  }
}

</mosaic_0001>

<llo_original>
// kernel: tpu_custom_call.1
$region0: #{tpu_custom_call.1}
  #allocation0 [shape = 'u32[]', space=smem, size = 0x4, offset = 0x4, fixed_abs, tag = 'smem constant byte address 0x4 - core index']
  #allocation1 [shape = 'u32[144,128]{1,0:T(1,128)}', space=vmem, size = 0x12000, scoped, tag = 'internal scratch']
  #allocation2 [shape = 's32[1]{0}', space=sflag, size = 0x4, scoped, tag = 'scoped memory for tpu_custom_call.1']
  #allocation3 [shape = 'u8[512]{0}', space=smem, size = 0x200, scoped, tag = 'prefetched SMEM operand 0']
  %s0 = inlined_call_operand.hbm [shape: f32[9], index: 0, kind: input, shape index: {}]
  %s1 = inlined_call_operand.hbm [shape: f32[2,8,512], index: 1, kind: input, shape index: {}]
  %s2 = inlined_call_operand.hbm [shape: f32[3,8,512], index: 2, kind: output, shape index: {}]
  %s3 = sld [smem:[#allocation0]]
  $region18: #{tpu_custom_call.1} parent=0
    _
  %s5 = ssub.s32 1, %s3
  %s6 = scalar_select 0, %s5, %s3
  %8 = dma.hbm_to_smem %s0, 16, [#allocation3], [#allocation2]
  %9 = dma.done [#allocation2], 16
  %10 = sfence
  $region1: #{tpu_custom_call.1} parent=0
    #allocation4 [shape = 'u8[32768]{0}', space=vmem, size = 0x8000, scoped, tag = 'input window, operand 1, single buffered']
    #allocation5 [shape = 's32[1]{0}', space=sflag, size = 0x4, scoped, tag = 'scoped memory for tpu_custom_call.1']
    #allocation6 [shape = 's32[1]{0}', space=sflag, size = 0x4, scoped, tag = 'scoped memory for tpu_custom_call.1']
    #allocation7 [shape = 'u8[49152]{0}', space=vmem, size = 0xc000, scoped, tag = 'output window, operand 0, single buffered']
    %11 = vsyncpa [#allocation5], 0
    %12 = vsyncpa [#allocation6], 0
    // Predicated region
    $region2: #{tpu_custom_call.1} parent=1 // pred_check
      _
    $region3: #{tpu_custom_call.1} parent=1 // pred_check_branch
      %14 = sbr.rel (0) target = $region5
    $region4: #{tpu_custom_call.1} parent=1 // pred_region
      %s16 = ssub.s32 1024, 1024
      %17 = vsyncadd [#allocation5], %s16
      %s18 = sshll.u32 [#allocation4], 4
      %s19 = int_to_ptr.vmem [resolvable:$true] %s18
      %24 = dma.hbm_to_vmem [thread:$0]  %s1, 1024, %s19, [#allocation5], 512, 512, 32
    $region5: #{tpu_custom_call.1} parent=1 // pred_fallthru
      _
    // Predicated region
    $region6: #{tpu_custom_call.1} parent=1 // pred_check
      _
    $region7: #{tpu_custom_call.1} parent=1 // pred_check_branch
      %26 = sbr.rel (0) target = $region9
    $region8: #{tpu_custom_call.1} parent=1 // pred_region
      %27 = dma.done [#allocation5], 1024
    $region9: #{tpu_custom_call.1} parent=1 // pred_fallthru
      _
    %v28 = vld [vmem:[#allocation4] sm:$0xff]
    %v29 = vld [vmem:[#allocation4 + $0x8] sm:$0xff]
    %v30 = vld [vmem:[#allocation4 + $0x10] sm:$0xff]
    %v31 = vld [vmem:[#allocation4 + $0x18] sm:$0xff]
    %s32 = scalar_lea.vmem [#allocation4], 32
    %v33 = vld [vmem:[%s32] sm:$0xff]
    %v34 = vld [vmem:[%s32 + $0x8] sm:$0xff]
    %v35 = vld [vmem:[%s32 + $0x10] sm:$0xff]
    %v36 = vld [vmem:[%s32 + $0x18] sm:$0xff]
    %v37 = vmul.f32 %v28, %v28
    %v38 = vmul.f32 %v29, %v29
    %v39 = vmul.f32 %v30, %v30
    %v40 = vmul.f32 %v31, %v31
    %v41 = vmul.f32 %v33, %v33
    %v42 = vmul.f32 %v34, %v34
    %v43 = vmul.f32 %v35, %v35
    %v44 = vmul.f32 %v36, %v36
    %s45 = sld [smem:[#allocation3]]
    %s46 = sld [smem:[#allocation3 + $0x1]]
    %s47 = sld [smem:[#allocation3 + $0x2]]
    %s48 = sld [smem:[#allocation3 + $0x3]]
    %s49 = sld [smem:[#allocation3 + $0x4]]
    %s50 = sld [smem:[#allocation3 + $0x5]]
    %s51 = sld [smem:[#allocation3 + $0x6]]
    %s52 = sld [smem:[#allocation3 + $0x7]]
    %s53 = sld [smem:[#allocation3 + $0x8]]
    %v54 = vstv %s51
    %v55 = vmul.f32 %v54, %v28
    %v56 = vmul.f32 %v54, %v29
    %v57 = vmul.f32 %v54, %v30
    %v58 = vmul.f32 %v54, %v31
    %v59 = vstv %s52
    %v60 = vmul.f32 %v59, %v33
    %v61 = vmul.f32 %v59, %v34
    %v62 = vmul.f32 %v59, %v35
    %v63 = vmul.f32 %v59, %v36
    %v64 = vadd.f32 %v55, %v60
    %v65 = vadd.f32 %v56, %v61
    %v66 = vadd.f32 %v57, %v62
    %v67 = vadd.f32 %v58, %v63
    %v68 = vstv %s53
    %v69 = vadd.f32 %v64, %v68
    %v70 = vadd.f32 %v65, %v68
    %v71 = vadd.f32 %v66, %v68
    %v72 = vadd.f32 %v67, %v68
    %v73 = vstv %s45
    %v74 = vmul.f32 %v73, %v37
    %v75 = vmul.f32 %v73, %v38
    %v76 = vmul.f32 %v73, %v39
    %v77 = vmul.f32 %v73, %v40
    %v78 = vstv %s46
    %v79 = vmul.f32 %v78, %v41
    %v80 = vmul.f32 %v78, %v42
    %v81 = vmul.f32 %v78, %v43
    %v82 = vmul.f32 %v78, %v44
    %v83 = vadd.f32 %v74, %v79
    %v84 = vadd.f32 %v75, %v80
    %v85 = vadd.f32 %v76, %v81
    %v86 = vadd.f32 %v77, %v82
    %v87 = vadd.f32 %v83, %v69
    %v88 = vadd.f32 %v84, %v70
    %v89 = vadd.f32 %v85, %v71
    %v90 = vadd.f32 %v86, %v72
    %91 = vst [vmem:[#allocation7] sm:$0xff] %v87
    %92 = vst [vmem:[#allocation7 + $0x8] sm:$0xff] %v88
    %93 = vst [vmem:[#allocation7 + $0x10] sm:$0xff] %v89
    %94 = vst [vmem:[#allocation7 + $0x18] sm:$0xff] %v90
    %v95 = vstv %s47
    %v96 = vmul.f32 %v95, %v37
    %v97 = vmul.f32 %v95, %v38
    %v98 = vmul.f32 %v95, %v39
    %v99 = vmul.f32 %v95, %v40
    %v100 = vstv %s48
    %v101 = vmul.f32 %v100, %v41
    %v102 = vmul.f32 %v100, %v42
    %v103 = vmul.f32 %v100, %v43
    %v104 = vmul.f32 %v100, %v44
    %v105 = vadd.f32 %v96, %v101
    %v106 = vadd.f32 %v97, %v102
    %v107 = vadd.f32 %v98, %v103
    %v108 = vadd.f32 %v99, %v104
    %v109 = vadd.f32 %v105, %v69
    %v110 = vadd.f32 %v106, %v70
    %v111 = vadd.f32 %v107, %v71
    %v112 = vadd.f32 %v108, %v72
    %s113 = scalar_lea.vmem [#allocation7], 32
    %114 = vst [vmem:[%s113] sm:$0xff] %v109
    %115 = vst [vmem:[%s113 + $0x8] sm:$0xff] %v110
    %116 = vst [vmem:[%s113 + $0x10] sm:$0xff] %v111
    %117 = vst [vmem:[%s113 + $0x18] sm:$0xff] %v112
    %v118 = vstv %s49
    %v119 = vmul.f32 %v118, %v37
    %v120 = vmul.f32 %v118, %v38
    %v121 = vmul.f32 %v118, %v39
    %v122 = vmul.f32 %v118, %v40
    %v123 = vstv %s50
    %v124 = vmul.f32 %v123, %v41
    %v125 = vmul.f32 %v123, %v42
    %v126 = vmul.f32 %v123, %v43
    %v127 = vmul.f32 %v123, %v44
    %v128 = vadd.f32 %v119, %v124
    %v129 = vadd.f32 %v120, %v125
    %v130 = vadd.f32 %v121, %v126
    %v131 = vadd.f32 %v122, %v127
    %v132 = vadd.f32 %v128, %v69
    %v133 = vadd.f32 %v129, %v70
    %v134 = vadd.f32 %v130, %v71
    %v135 = vadd.f32 %v131, %v72
    %s136 = scalar_lea.vmem [#allocation7], 64
    %137 = vst [vmem:[%s136] sm:$0xff] %v132
    %138 = vst [vmem:[%s136 + $0x8] sm:$0xff] %v133
    %139 = vst [vmem:[%s136 + $0x10] sm:$0xff] %v134
    %140 = vst [vmem:[%s136 + $0x18] sm:$0xff] %v135
    // Predicated region
    $region10: #{tpu_custom_call.1} parent=1 // pred_check
      _
    $region11: #{tpu_custom_call.1} parent=1 // pred_check_branch
      %142 = sbr.rel (0) target = $region13
    $region12: #{tpu_custom_call.1} parent=1 // pred_region
      %s144 = ssub.s32 1536, 1536
      %145 = vsyncadd [#allocation6], %s144
      %s146 = sshll.u32 [#allocation7], 4
      %s147 = int_to_ptr.vmem [resolvable:$true] %s146
      %152 = dma.vmem_to_hbm [thread:$0]  %s147, 1536, %s2, [#allocation6], 512, 512, 32
    $region13: #{tpu_custom_call.1} parent=1 // pred_fallthru
      _
    // Predicated region
    $region14: #{tpu_custom_call.1} parent=1 // pred_check
      _
    $region15: #{tpu_custom_call.1} parent=1 // pred_check_branch
      %154 = sbr.rel (0) target = $region17
    $region16: #{tpu_custom_call.1} parent=1 // pred_region
      %155 = dma.done [#allocation6], 1536
    $region17: #{tpu_custom_call.1} parent=1 // pred_fallthru
      _
    %156 = vsyncpa [#allocation5], 1
    %157 = vsyncpa [#allocation6], 1

</llo_original>
